<compile_context>
chip_gen: v7x
topology: tpu7x:2x2x1
jax: 0.10.0
libtpu: 0.0.40
codegen_flags: <defaults>
</compile_context>

<pallas_src>
import jax
import jax.numpy as jnp
from jax.experimental import pallas as pl
from jax.experimental.pallas import tpu as pltpu

# ---- model hyper-parameters (synthetic Mask R-CNN-ish head) ----------------
B = 2            # batch of images
C_IN = 4         # input channels
H = W = 16       # image spatial size
HW = H * W       # 256
C_FEAT = 32      # backbone feature channels
N_DET = 8        # detections per image
NUM_CLASSES = 5  # classification logits per detection
MASK_H = MASK_W = 14  # per-detection mask resolution

BOX_DIM = N_DET * 4                      # 32
CLS_DIM = N_DET * NUM_CLASSES            # 40
MASK_DIM = N_DET * MASK_H * MASK_W       # 1568
HEAD_DIM = BOX_DIM + CLS_DIM + MASK_DIM  # 1640 (not 128-aligned)
HEAD_PAD = pl.cdiv(HEAD_DIM, 128) * 128  # 1664 — lane-aligned output width


# ---------------------------------------------------------------------------
# Fused kernel: backbone (1x1 conv as matmul) + ReLU + global-avg-pool + head
# dense layer + sigmoid epilogue, for image 0 only.
#   x_ref  : (C_IN, HW)        image 0, NCHW flattened — spatial on lanes
#   w1t_ref: (C_FEAT, C_IN)    backbone weight, pre-transposed
#   b1_ref : (C_FEAT, 1)       backbone bias (broadcast over lanes)
#   w2_ref : (C_FEAT, HEAD_PAD) head weight, column-padded to 128 multiple
#   b2_ref : (1, HEAD_PAD)      head bias, padded
#   o_ref  : (1, HEAD_PAD)      head output with sigmoid applied to box+mask cols
# ---------------------------------------------------------------------------
def fused_kernel(x_ref, w1t_ref, b1_ref, w2_ref, b2_ref, o_ref):
    # backbone: (C_FEAT, C_IN) @ (C_IN, HW) -> (C_FEAT, HW); lane axis = 256.
    h = jnp.dot(w1t_ref[...], x_ref[...], preferred_element_type=jnp.float32)
    h = jnp.maximum(h + b1_ref[...], 0.0)              # bias (lane bcast) + ReLU
    feat = jnp.mean(h, axis=1, keepdims=True)          # (C_FEAT, 1) lane reduce

    # head: feat^T @ w2 with M=1 — done as broadcast-multiply + sublane reduce
    # on the VPU (MXU would be ~99% idle for a single output row, and this
    # avoids a transposed-LHS dot).  ~53K MACs: negligible either way.
    raw = (jnp.sum(feat * w2_ref[...], axis=0, keepdims=True)
           + b2_ref[...])                              # (1, HEAD_PAD)

    # fused epilogue: sigmoid on box + mask segments (EUP); cls logits stay raw
    # for the tiny softmax/argmax done in the wrapper.
    col = jax.lax.broadcasted_iota(jnp.int32, raw.shape, 1)
    sig_cols = (col < BOX_DIM) | ((col >= BOX_DIM + CLS_DIM) & (col < HEAD_DIM))
    o_ref[...] = jnp.where(sig_cols, jax.nn.sigmoid(raw), raw)


def fused_forward(x0, w1t, b1, w2p, b2p):
    return pl.pallas_call(
        fused_kernel,
        out_shape=jax.ShapeDtypeStruct((1, HEAD_PAD), jnp.float32),
        grid=(1,),
        in_specs=[
            pl.BlockSpec((C_IN, HW), lambda i: (0, 0)),
            pl.BlockSpec((C_FEAT, C_IN), lambda i: (0, 0)),
            pl.BlockSpec((C_FEAT, 1), lambda i: (0, 0)),
            pl.BlockSpec((C_FEAT, HEAD_PAD), lambda i: (0, 0)),
            pl.BlockSpec((1, HEAD_PAD), lambda i: (0, 0)),
        ],
        out_specs=pl.BlockSpec((1, HEAD_PAD), lambda i: (0, 0)),
        compiler_params=pltpu.CompilerParams(
            dimension_semantics=("arbitrary",)),
    )(x0, w1t, b1, w2p, b2p)


# ---------------------------------------------------------------------------
# TraceWrapper.forward equivalent.
# ---------------------------------------------------------------------------
def dict_to_tuple(out_dict):
    if "masks" in out_dict.keys():
        return (out_dict["boxes"], out_dict["scores"],
                out_dict["labels"], out_dict["masks"])
    return (out_dict["boxes"], out_dict["scores"], out_dict["labels"])


def trace_wrapper_forward(inp_nchw, params):
    """inp_nchw: (B, C_IN, H, W) float32 — PyTorch NCHW convention.

    TraceWrapper returns dict_to_tuple(model(inp)[0]); only image 0 contributes
    to the result, so only image 0 is run through the fused kernel
    (semantically identical to running the batch and indexing [0]).
    """
    w1t, b1, w2p, b2p = params

    # Keep NCHW: (C_IN, H, W) -> (C_IN, HW) puts the spatial axis on TPU lanes;
    # no transpose op needed on the host side.
    x0 = inp_nchw[0].reshape(C_IN, HW).astype(jnp.float32)

    raw = fused_forward(x0, w1t, b1, w2p, b2p)[0, :HEAD_DIM]   # (HEAD_DIM,)

    # ---- per-detection post-processing (tiny glue; sigmoids already fused) --
    cxcywh = raw[:BOX_DIM].reshape(N_DET, 4)                   # sigmoid'd in-kernel
    cls_logits = raw[BOX_DIM:BOX_DIM + CLS_DIM].reshape(N_DET, NUM_CLASSES)
    masks = raw[BOX_DIM + CLS_DIM:].reshape(N_DET, 1, MASK_H, MASK_W)  # sigmoid'd

    # decode (cx, cy, w, h) in [0,1] -> corner boxes in image pixels
    cx, cy = cxcywh[:, 0] * W, cxcywh[:, 1] * H
    bw, bh = cxcywh[:, 2] * W, cxcywh[:, 3] * H
    x1 = jnp.clip(cx - bw / 2, 0.0, float(W))
    y1 = jnp.clip(cy - bh / 2, 0.0, float(H))
    x2 = jnp.clip(cx + bw / 2, 0.0, float(W))
    y2 = jnp.clip(cy + bh / 2, 0.0, float(H))
    boxes = jnp.stack([x1, y1, x2, y2], axis=-1)               # (N, 4)

    probs = jax.nn.softmax(cls_logits, axis=-1)                # 40 elems: glue
    scores = jnp.max(probs, axis=-1)                           # (N,)
    # TODO(synk): torchvision returns int64 labels; int32 used on TPU (no x64).
    labels = jnp.argmax(probs, axis=-1).astype(jnp.int32)      # (N,)

    out0 = {"boxes": boxes, "scores": scores,
            "labels": labels, "masks": masks}
    return dict_to_tuple(out0)


# ---------------------------------------------------------------------------
def init_params(key):
    k1, k2, k3, k4 = jax.random.split(key, 4)
    w1 = jax.random.normal(k1, (C_IN, C_FEAT), jnp.float32) * 0.1
    b1 = jax.random.normal(k2, (C_FEAT, 1), jnp.float32) * 0.01
    w2 = jax.random.normal(k3, (C_FEAT, HEAD_DIM), jnp.float32) * 0.1
    b2 = jax.random.normal(k4, (1, HEAD_DIM), jnp.float32) * 0.01
    # Transpose w1 once (lane-dense backbone contraction) and pad the head
    # params to the 128-aligned output width.
    w1t = jnp.asarray(w1.T)                                    # (C_FEAT, C_IN)
    w2p = jnp.pad(w2, ((0, 0), (0, HEAD_PAD - HEAD_DIM)))      # (C_FEAT, HEAD_PAD)
    b2p = jnp.pad(b2, ((0, 0), (0, HEAD_PAD - HEAD_DIM)))      # (1, HEAD_PAD)
    return (w1t, b1, w2p, b2p)


if __name__ == "__main__":
    key = jax.random.PRNGKey(0)
    pkey, xkey = jax.random.split(key)
    params = init_params(pkey)
    x = jax.random.normal(xkey, (B, C_IN, H, W), jnp.float32)  # NCHW input

    fwd = jax.jit(lambda inp: trace_wrapper_forward(inp, params))
    boxes, scores, labels, masks = fwd(x)
    jax.block_until_ready((boxes, scores, labels, masks))

    assert boxes.shape == (N_DET, 4) and boxes.dtype == jnp.float32
    assert scores.shape == (N_DET,) and scores.dtype == jnp.float32
    assert labels.shape == (N_DET,)
    assert masks.shape == (N_DET, 1, MASK_H, MASK_W)
    assert bool(jnp.all(jnp.isfinite(boxes)))
    assert bool(jnp.all((scores >= 0.0) & (scores <= 1.0)))
    assert bool(jnp.all((masks >= 0.0) & (masks <= 1.0)))

    print("KERNEL_OK")
</pallas_src>

<mosaic_0001>
module attributes {stable_mosaic.version = 11 : i64} {
  func.func @fused_kernel(%arg0: i32, %arg1: memref<4x256xf32, #tpu.memory_space<vmem>>, %arg2: memref<32x4xf32, #tpu.memory_space<vmem>>, %arg3: memref<32x1xf32, #tpu.memory_space<vmem>>, %arg4: memref<32x1664xf32, #tpu.memory_space<vmem>>, %arg5: memref<1x1664xf32, #tpu.memory_space<vmem>>, %arg6: memref<1x1664xf32, #tpu.memory_space<vmem>>) attributes {dimension_semantics = [#tpu.dimension_semantics<arbitrary>], iteration_bounds = array<i64: 1>, scalar_prefetch = 0 : i64, scratch_operands = 0 : i64, tpu.core_type = #tpu.core_type<tc>, window_params = [{pipeline_mode = #tpu.pipeline_mode<synchronous>, transform_indices = @transform_0, window_bounds = array<i64: 4, 256>}, {pipeline_mode = #tpu.pipeline_mode<synchronous>, transform_indices = @transform_1, window_bounds = array<i64: 32, 4>}, {pipeline_mode = #tpu.pipeline_mode<synchronous>, transform_indices = @transform_2, window_bounds = array<i64: 32, 1>}, {pipeline_mode = #tpu.pipeline_mode<synchronous>, transform_indices = @transform_3, window_bounds = array<i64: 32, 1664>}, {pipeline_mode = #tpu.pipeline_mode<synchronous>, transform_indices = @transform_4, window_bounds = array<i64: 1, 1664>}, {pipeline_mode = #tpu.pipeline_mode<synchronous>, transform_indices = @transform_5, window_bounds = array<i64: 1, 1664>}]} {
    %c0 = arith.constant 0 : index
    %c0_0 = arith.constant 0 : index
    %0 = vector.load %arg2[%c0, %c0_0] : memref<32x4xf32, #tpu.memory_space<vmem>>, vector<32x4xf32>
    %c0_1 = arith.constant 0 : index
    %c0_2 = arith.constant 0 : index
    %1 = vector.load %arg1[%c0_1, %c0_2] : memref<4x256xf32, #tpu.memory_space<vmem>>, vector<4x256xf32>
    %cst = arith.constant dense<0.000000e+00> : vector<32x256xf32>
    %2 = tpu.matmul %0, %1, %cst {dimension_numbers = #tpu.dot_dimension_numbers<[1], [0], [0], [1], [0, 0, 1, 1], [], []>} : vector<32x4xf32>, vector<4x256xf32>, vector<32x256xf32> -> vector<32x256xf32>
    %c0_3 = arith.constant 0 : index
    %c0_4 = arith.constant 0 : index
    %3 = vector.load %arg3[%c0_3, %c0_4] : memref<32x1xf32, #tpu.memory_space<vmem>>, vector<32x1xf32>
    %4 = vector.broadcast %3 : vector<32x1xf32> to vector<32x256xf32>
    %5 = arith.addf %2, %4 : vector<32x256xf32>
    %cst_5 = arith.constant 0.000000e+00 : f32
    %6 = vector.broadcast %cst_5 : f32 to vector<32x256xf32>
    %7 = arith.maximumf %5, %6 : vector<32x256xf32>
    %cst_6 = arith.constant dense<0.000000e+00> : vector<32xf32>
    %8 = vector.multi_reduction <add>, %7, %cst_6 [1] : vector<32x256xf32> to vector<32xf32>
    %9 = vector.shape_cast %8 : vector<32xf32> to vector<32x1xf32>
    %cst_7 = arith.constant 2.560000e+02 : f32
    %10 = vector.broadcast %cst_7 : f32 to vector<32x1xf32>
    %11 = arith.divf %9, %10 : vector<32x1xf32>
    %c0_8 = arith.constant 0 : index
    %c0_9 = arith.constant 0 : index
    %12 = vector.load %arg4[%c0_8, %c0_9] : memref<32x1664xf32, #tpu.memory_space<vmem>>, vector<32x1664xf32>
    %13 = vector.broadcast %11 : vector<32x1xf32> to vector<32x1664xf32>
    %14 = arith.mulf %13, %12 : vector<32x1664xf32>
    %cst_10 = arith.constant dense<0.000000e+00> : vector<1664xf32>
    %15 = vector.multi_reduction <add>, %14, %cst_10 [0] : vector<32x1664xf32> to vector<1664xf32>
    %16 = vector.shape_cast %15 : vector<1664xf32> to vector<1x1664xf32>
    %c0_11 = arith.constant 0 : index
    %c0_12 = arith.constant 0 : index
    %17 = vector.load %arg5[%c0_11, %c0_12] : memref<1x1664xf32, #tpu.memory_space<vmem>>, vector<1x1664xf32>
    %18 = arith.addf %16, %17 : vector<1x1664xf32>
    %19 = tpu.iota {dimensions = array<i32: 1>} : vector<1x1664xi32>
    %c32_i32 = arith.constant 32 : i32
    %20 = vector.broadcast %c32_i32 : i32 to vector<1x1664xi32>
    %21 = arith.cmpi slt, %19, %20 : vector<1x1664xi32>
    %c72_i32 = arith.constant 72 : i32
    %22 = vector.broadcast %c72_i32 : i32 to vector<1x1664xi32>
    %23 = arith.cmpi sge, %19, %22 : vector<1x1664xi32>
    %c1640_i32 = arith.constant 1640 : i32
    %24 = vector.broadcast %c1640_i32 : i32 to vector<1x1664xi32>
    %25 = arith.cmpi slt, %19, %24 : vector<1x1664xi32>
    %26 = arith.andi %23, %25 : vector<1x1664xi1>
    %27 = arith.ori %21, %26 : vector<1x1664xi1>
    %28 = arith.negf %18 : vector<1x1664xf32>
    %29 = math.exp %28 : vector<1x1664xf32>
    %cst_13 = arith.constant 1.000000e+00 : f32
    %30 = vector.broadcast %cst_13 : f32 to vector<1x1664xf32>
    %31 = arith.addf %30, %29 : vector<1x1664xf32>
    %32 = arith.divf %30, %31 : vector<1x1664xf32>
    %33 = arith.select %27, %32, %18 : vector<1x1664xi1>, vector<1x1664xf32>
    %c0_14 = arith.constant 0 : index
    %c0_15 = arith.constant 0 : index
    %34 = vector.load %arg6[%c0_14, %c0_15] : memref<1x1664xf32, #tpu.memory_space<vmem>>, vector<1x1664xf32>
    tpu.vector_store %arg6[%c0_14, %c0_15], %33 {strides = array<i32>} : memref<1x1664xf32, #tpu.memory_space<vmem>>, vector<1x1664xf32>,
    return
  }
  func.func @transform_0(%arg0: i32) -> (i32, i32) {
    %c0_i32 = arith.constant 0 : i32
    %c0_i32_0 = arith.constant 0 : i32
    %c0_i32_1 = arith.constant 0 : i32
    return %c0_i32, %c0_i32_0 : i32, i32
  }
  func.func @transform_1(%arg0: i32) -> (i32, i32) {
    %c0_i32 = arith.constant 0 : i32
    %c0_i32_0 = arith.constant 0 : i32
    %c0_i32_1 = arith.constant 0 : i32
    return %c0_i32, %c0_i32_0 : i32, i32
  }
  func.func @transform_2(%arg0: i32) -> (i32, i32) {
    %c0_i32 = arith.constant 0 : i32
    %c0_i32_0 = arith.constant 0 : i32
    %c0_i32_1 = arith.constant 0 : i32
    return %c0_i32, %c0_i32_0 : i32, i32
  }
  func.func @transform_3(%arg0: i32) -> (i32, i32) {
    %c0_i32 = arith.constant 0 : i32
    %c0_i32_0 = arith.constant 0 : i32
    %c0_i32_1 = arith.constant 0 : i32
    return %c0_i32, %c0_i32_0 : i32, i32
  }
  func.func @transform_4(%arg0: i32) -> (i32, i32) {
    %c0_i32 = arith.constant 0 : i32
    %c0_i32_0 = arith.constant 0 : i32
    %c0_i32_1 = arith.constant 0 : i32
    return %c0_i32, %c0_i32_0 : i32, i32
  }
  func.func @transform_5(%arg0: i32) -> (i32, i32) {
    %c0_i32 = arith.constant 0 : i32
    %c0_i32_0 = arith.constant 0 : i32
    %c0_i32_1 = arith.constant 0 : i32
    return %c0_i32, %c0_i32_0 : i32, i32
  }
}

</mosaic_0001>

<llo_original>
// kernel: squeeze.6
$region0: #{squeeze.6}
  %s0 = inlined_call_operand.vmem [shape: f32[1,4,16,16], index: 0, kind: input, shape index: {}]
  %s1 = inlined_call_operand.vmem [shape: f32[4,256], index: 1, kind: output, shape index: {}]
  $region1: #{squeeze.6} parent=0
    #allocation0 [shape = 'u8[8192]{0}', space=vmem, size = 0x2000, scoped, tag = 'scoped mem for output reshape']
    %v2 = vld [vmem:[%s0] ss:$8 sm:$0xf]
    %v3 = vld [vmem:[%s0] ss:$8 sm:$0xf0]
    %vm4 = vcmask 1047556
    %v5 = vsel %vm4, %v3, %v2
    %vm6 = vcmask 130048
    %7 = vst.msk [vmem:[#allocation0] ss:$8 sm:$0x3] %vm6, %v5
    %s8 = scalar_lea.vmem [#allocation0], 4294967281
    %9 = vst.msk [vmem:[%s8] ss:$8 sm:$0xc] %vm6, %v5
    %s10 = scalar_lea.vmem [#allocation0], 4294967266
    %11 = vst.msk [vmem:[%s10] ss:$8 sm:$0x30] %vm6, %v5
    %s12 = scalar_lea.vmem [#allocation0], 4294967251
    %13 = vst.msk [vmem:[%s12] ss:$8 sm:$0xc0] %vm6, %v5
    %s14 = scalar_lea.vmem %s0, 7
    %s15 = smov 3
    %v16 = vld [vmem:[%s14] ss:$16 sm:%s15]
    %s17 = scalar_lea.vmem %s0, 7
    %s18 = smov 12
    %v19 = vld [vmem:[%s17] ss:$16 sm:%s18]
    %vm20 = vcmask 1043458
    %v21 = vsel %vm20, %v19, %v16
    %s22 = scalar_lea.vmem %s0, 4294967247
    %s23 = smov 48
    %v24 = vld [vmem:[%s22] ss:$16 sm:%s23]
    %vm25 = vcmask 1045508
    %v26 = vsel %vm25, %v24, %v21
    %s27 = scalar_lea.vmem %s0, 4294967247
    %s28 = smov 192
    %v29 = vld [vmem:[%s27] ss:$16 sm:%s28]
    %vm30 = vcmask 1047558
    %v31 = vsel %vm30, %v29, %v26
    %32 = vrot.lane.b32.xlu0 %v31, 112
    %v33 = vpop.permute.xlu0 %32
    %vm34 = vcmask 1048448
    %35 = vst.msk [vmem:[#allocation0] sm:$0xf] %vm34, %v33
    %s36 = scalar_lea.vmem [#allocation0], 4
    %37 = vst.msk [vmem:[%s36] sm:$0xf0] %vm34, %v33
    %s38 = scalar_lea.vmem %s0, 6
    %s39 = smov 3
    %v40 = vld [vmem:[%s38] ss:$16 sm:%s39]
    %s41 = scalar_lea.vmem %s0, 6
    %s42 = smov 12
    %v43 = vld [vmem:[%s41] ss:$16 sm:%s42]
    %vm44 = vcmask 1043458
    %v45 = vsel %vm44, %v43, %v40
    %s46 = scalar_lea.vmem %s0, 4294967246
    %s47 = smov 48
    %v48 = vld [vmem:[%s46] ss:$16 sm:%s47]
    %vm49 = vcmask 1045508
    %v50 = vsel %vm49, %v48, %v45
    %s51 = scalar_lea.vmem %s0, 4294967246
    %s52 = smov 192
    %v53 = vld [vmem:[%s51] ss:$16 sm:%s52]
    %vm54 = vcmask 1047558
    %v55 = vsel %vm54, %v53, %v50
    %56 = vrot.lane.b32.xlu0 %v55, 96
    %v57 = vpop.permute.xlu0 %56
    %vm58 = vcmask 917248
    %59 = vst.msk [vmem:[#allocation0] sm:$0xf] %vm58, %v57
    %s60 = scalar_lea.vmem [#allocation0], 4
    %61 = vst.msk [vmem:[%s60] sm:$0xf0] %vm58, %v57
    %s62 = scalar_lea.vmem %s0, 5
    %s63 = smov 3
    %v64 = vld [vmem:[%s62] ss:$16 sm:%s63]
    %s65 = scalar_lea.vmem %s0, 5
    %s66 = smov 12
    %v67 = vld [vmem:[%s65] ss:$16 sm:%s66]
    %vm68 = vcmask 1043458
    %v69 = vsel %vm68, %v67, %v64
    %s70 = scalar_lea.vmem %s0, 4294967245
    %s71 = smov 48
    %v72 = vld [vmem:[%s70] ss:$16 sm:%s71]
    %vm73 = vcmask 1045508
    %v74 = vsel %vm73, %v72, %v69
    %s75 = scalar_lea.vmem %s0, 4294967245
    %s76 = smov 192
    %v77 = vld [vmem:[%s75] ss:$16 sm:%s76]
    %vm78 = vcmask 1047558
    %v79 = vsel %vm78, %v77, %v74
    %80 = vrot.lane.b32.xlu0 %v79, 80
    %v81 = vpop.permute.xlu0 %80
    %vm82 = vcmask 786048
    %83 = vst.msk [vmem:[#allocation0] sm:$0xf] %vm82, %v81
    %s84 = scalar_lea.vmem [#allocation0], 4
    %85 = vst.msk [vmem:[%s84] sm:$0xf0] %vm82, %v81
    %s86 = scalar_lea.vmem %s0, 4
    %s87 = smov 3
    %v88 = vld [vmem:[%s86] ss:$16 sm:%s87]
    %s89 = scalar_lea.vmem %s0, 4
    %s90 = smov 12
    %v91 = vld [vmem:[%s89] ss:$16 sm:%s90]
    %vm92 = vcmask 1043458
    %v93 = vsel %vm92, %v91, %v88
    %s94 = scalar_lea.vmem %s0, 4294967244
    %s95 = smov 48
    %v96 = vld [vmem:[%s94] ss:$16 sm:%s95]
    %vm97 = vcmask 1045508
    %v98 = vsel %vm97, %v96, %v93
    %s99 = scalar_lea.vmem %s0, 4294967244
    %s100 = smov 192
    %v101 = vld [vmem:[%s99] ss:$16 sm:%s100]
    %vm102 = vcmask 1047558
    %v103 = vsel %vm102, %v101, %v98
    %104 = vrot.lane.b32.xlu0 %v103, 64
    %v105 = vpop.permute.xlu0 %104
    %vm106 = vcmask 654848
    %107 = vst.msk [vmem:[#allocation0] sm:$0xf] %vm106, %v105
    %s108 = scalar_lea.vmem [#allocation0], 4
    %109 = vst.msk [vmem:[%s108] sm:$0xf0] %vm106, %v105
    %s110 = scalar_lea.vmem %s0, 3
    %s111 = smov 3
    %v112 = vld [vmem:[%s110] ss:$16 sm:%s111]
    %s113 = scalar_lea.vmem %s0, 3
    %s114 = smov 12
    %v115 = vld [vmem:[%s113] ss:$16 sm:%s114]
    %vm116 = vcmask 1043458
    %v117 = vsel %vm116, %v115, %v112
    %s118 = scalar_lea.vmem %s0, 4294967243
    %s119 = smov 48
    %v120 = vld [vmem:[%s118] ss:$16 sm:%s119]
    %vm121 = vcmask 1045508
    %v122 = vsel %vm121, %v120, %v117
    %s123 = scalar_lea.vmem %s0, 4294967243
    %s124 = smov 192
    %v125 = vld [vmem:[%s123] ss:$16 sm:%s124]
    %vm126 = vcmask 1047558
    %v127 = vsel %vm126, %v125, %v122
    %128 = vrot.lane.b32.xlu0 %v127, 48
    %v129 = vpop.permute.xlu0 %128
    %vm130 = vcmask 523648
    %131 = vst.msk [vmem:[#allocation0] sm:$0xf] %vm130, %v129
    %s132 = scalar_lea.vmem [#allocation0], 4
    %133 = vst.msk [vmem:[%s132] sm:$0xf0] %vm130, %v129
    %s134 = scalar_lea.vmem %s0, 2
    %s135 = smov 3
    %v136 = vld [vmem:[%s134] ss:$16 sm:%s135]
    %s137 = scalar_lea.vmem %s0, 2
    %s138 = smov 12
    %v139 = vld [vmem:[%s137] ss:$16 sm:%s138]
    %vm140 = vcmask 1043458
    %v141 = vsel %vm140, %v139, %v136
    %s142 = scalar_lea.vmem %s0, 4294967242
    %s143 = smov 48
    %v144 = vld [vmem:[%s142] ss:$16 sm:%s143]
    %vm145 = vcmask 1045508
    %v146 = vsel %vm145, %v144, %v141
    %s147 = scalar_lea.vmem %s0, 4294967242
    %s148 = smov 192
    %v149 = vld [vmem:[%s147] ss:$16 sm:%s148]
    %vm150 = vcmask 1047558
    %v151 = vsel %vm150, %v149, %v146
    %152 = vrot.lane.b32.xlu0 %v151, 32
    %v153 = vpop.permute.xlu0 %152
    %vm154 = vcmask 392448
    %155 = vst.msk [vmem:[#allocation0] sm:$0xf] %vm154, %v153
    %s156 = scalar_lea.vmem [#allocation0], 4
    %157 = vst.msk [vmem:[%s156] sm:$0xf0] %vm154, %v153
    %s158 = scalar_lea.vmem %s0, 1
    %s159 = smov 3
    %v160 = vld [vmem:[%s158] ss:$16 sm:%s159]
    %s161 = scalar_lea.vmem %s0, 1
    %s162 = smov 12
    %v163 = vld [vmem:[%s161] ss:$16 sm:%s162]
    %vm164 = vcmask 1043458
    %v165 = vsel %vm164, %v163, %v160
    %s166 = scalar_lea.vmem %s0, 4294967241
    %s167 = smov 48
    %v168 = vld [vmem:[%s166] ss:$16 sm:%s167]
    %vm169 = vcmask 1045508
    %v170 = vsel %vm169, %v168, %v165
    %s171 = scalar_lea.vmem %s0, 4294967241
    %s172 = smov 192
    %v173 = vld [vmem:[%s171] ss:$16 sm:%s172]
    %vm174 = vcmask 1047558
    %v175 = vsel %vm174, %v173, %v170
    %176 = vrot.lane.b32.xlu0 %v175, 16
    %v177 = vpop.permute.xlu0 %176
    %vm178 = vcmask 261248
    %179 = vst.msk [vmem:[#allocation0] sm:$0xf] %vm178, %v177
    %s180 = scalar_lea.vmem [#allocation0], 4
    %181 = vst.msk [vmem:[%s180] sm:$0xf0] %vm178, %v177
    %s183 = sshllo.u32 0, 4
    %v185 = vld [vmem:[#allocation0] sm:%s183]
    %s186 = sshllo.u32 0, 4
    %187 = vst [vmem:[%s1] sm:%s186] %v185
    %s188 = scalar_lea.vmem [#allocation0], 8
    %v189 = vld [vmem:[%s188] sm:%s183]
    %s190 = sshllo.u32 0, 4
    %s191 = scalar_lea.vmem %s1, 4
    %192 = vst [vmem:[%s191] sm:%s190] %v189

// kernel: _lambda_.1
$region0: #{_lambda_.1}
  #allocation0 [shape = 'u32[]', space=smem, size = 0x4, offset = 0x4, fixed_abs, tag = 'smem constant byte address 0x4 - core index']
  #allocation1 [shape = 'u32[144,128]{1,0:T(1,128)}', space=vmem, size = 0x12000, scoped, tag = 'internal scratch']
  %s0 = inlined_call_operand.vmem [shape: f32[4,256], index: 0, kind: input, shape index: {}]
  %s1 = inlined_call_operand.vmem [shape: f32[32,4], index: 1, kind: input, shape index: {}]
  %s2 = inlined_call_operand.vmem [shape: f32[32,1], index: 2, kind: input, shape index: {}]
  %s3 = inlined_call_operand.hbm [shape: f32[32,1664], index: 3, kind: input, shape index: {}]
  %s4 = inlined_call_operand.vmem [shape: f32[1,1664], index: 4, kind: input, shape index: {}]
  %s5 = inlined_call_operand.vmem [shape: f32[1,1664], index: 5, kind: output, shape index: {}]
  %s6 = sld [smem:[#allocation0]]
  $region34: #{_lambda_.1} parent=0
    _
  %s8 = ssub.s32 1, %s6
  %s9 = scalar_select 0, %s8, %s6
  $region1: #{_lambda_.1} parent=0
    #allocation2 [shape = 'u8[212992]{0}', space=vmem, size = 0x34000, scoped, tag = 'input window, operand 3, single buffered']
    #allocation3 [shape = 's32[1]{0}', space=sflag, size = 0x4, scoped, tag = 'scoped memory for _lambda_.1']
    %10 = vsyncpa [#allocation3], 0
    // Predicated region
    $region2: #{_lambda_.1} parent=1 // pred_check
      _
    $region3: #{_lambda_.1} parent=1 // pred_check_branch
      %12 = sbr.rel (0) target = $region5
    $region4: #{_lambda_.1} parent=1 // pred_region
      _
    $region5: #{_lambda_.1} parent=1 // pred_fallthru
      _
    // Predicated region
    $region6: #{_lambda_.1} parent=1 // pred_check
      _
    $region7: #{_lambda_.1} parent=1 // pred_check_branch
      %14 = sbr.rel (0) target = $region9
    $region8: #{_lambda_.1} parent=1 // pred_region
      _
    $region9: #{_lambda_.1} parent=1 // pred_fallthru
      _
    // Predicated region
    $region10: #{_lambda_.1} parent=1 // pred_check
      _
    $region11: #{_lambda_.1} parent=1 // pred_check_branch
      %16 = sbr.rel (0) target = $region13
    $region12: #{_lambda_.1} parent=1 // pred_region
      _
    $region13: #{_lambda_.1} parent=1 // pred_fallthru
      _
    // Predicated region
    $region14: #{_lambda_.1} parent=1 // pred_check
      _
    $region15: #{_lambda_.1} parent=1 // pred_check_branch
      %18 = sbr.rel (0) target = $region17
    $region16: #{_lambda_.1} parent=1 // pred_region
      %s20 = ssub.s32 6656, 6656
      %21 = vsyncadd [#allocation3], %s20
      %s22 = sshll.u32 [#allocation2], 4
      %s23 = int_to_ptr.vmem [resolvable:$true] %s22
      %28 = dma.hbm_to_vmem [thread:$0]  %s3, 6656, %s23, [#allocation3], 1664, 1664, 104
    $region17: #{_lambda_.1} parent=1 // pred_fallthru
      _
    // Predicated region
    $region18: #{_lambda_.1} parent=1 // pred_check
      _
    $region19: #{_lambda_.1} parent=1 // pred_check_branch
      %30 = sbr.rel (0) target = $region21
    $region20: #{_lambda_.1} parent=1 // pred_region
      _
    $region21: #{_lambda_.1} parent=1 // pred_fallthru
      _
    // Predicated region
    $region22: #{_lambda_.1} parent=1 // pred_check
      _
    $region23: #{_lambda_.1} parent=1 // pred_check_branch
      %32 = sbr.rel (0) target = $region25
    $region24: #{_lambda_.1} parent=1 // pred_region
      %33 = dma.done [#allocation3], 6656
    $region25: #{_lambda_.1} parent=1 // pred_fallthru
      _
    %v34 = vld [vmem:[%s1] sm:$0xff]
    %v35 = vld [vmem:[%s1 + $0x8] sm:$0xff]
    %v36 = vld [vmem:[%s1 + $0x10] sm:$0xff]
    %v37 = vld [vmem:[%s1 + $0x18] sm:$0xff]
    %v38 = vld [vmem:[%s0] sm:$0xff]
    %v39 = vld [vmem:[%s2] sm:$0xff]
    %v40 = vld [vmem:[%s2 + $0x8] sm:$0xff]
    %v41 = vld [vmem:[%s2 + $0x10] sm:$0xff]
    %v42 = vld [vmem:[%s2 + $0x18] sm:$0xff]
    %44 = vset.pattern.permute.xlu0 0
    %45 = vperm.xlu0 %44, %v39
    %v46 = vpop.permute.xlu0 %45
    %49 = vset.pattern.permute.xlu0 0
    %50 = vperm.xlu0 %49, %v40
    %v51 = vpop.permute.xlu0 %50
    %54 = vset.pattern.permute.xlu0 0
    %55 = vperm.xlu0 %54, %v41
    %v56 = vpop.permute.xlu0 %55
    %59 = vset.pattern.permute.xlu0 0
    %60 = vperm.xlu0 %59, %v42
    %v61 = vpop.permute.xlu0 %60
    %v64 = vcombine.high %v38, %v38
    %vm65 = vcmask 31744
    %v67 = vsel %vm65, %v34, 0
    %v70 = vsel %vm65, %v35, 0
    %v73 = vsel %vm65, %v36, 0
    %v76 = vsel %vm65, %v37, 0
    %vm78 = vcmask 1043456
    %v79 = vsel %vm78, %v38, 0
    %v81 = vsel %vm78, %v64, 0
    %83 = vmatprep.subr.mxu0 %v81
    %84 = vmatpush1.msra.mxu0 %v79
    %85 = vmatprep.subr.mxu0 0.0
    %86 = vmatpush1.msra.mxu0 0.0
    %87 = vmatprep.subr.mxu0 0.0
    %88 = vmatpush1.msra.mxu0 0.0
    %89 = vmatprep.subr.mxu0 0.0
    %90 = vmatpush1.msra.mxu0 0.0
    %91 = vmatprep.subr.mxu0 0.0
    %92 = vmatpush1.msra.mxu0 0.0
    %93 = vmatprep.subr.mxu0 0.0
    %94 = vmatpush1.msra.mxu0 0.0
    %95 = vmatprep.subr.mxu0 0.0
    %96 = vmatpush1.msra.mxu0 0.0
    %97 = vmatprep.subr.mxu0 0.0
    %98 = vmatpush1.msra.mxu0 0.0
    %99 = vmatprep.subr.mxu0 0.0
    %100 = vmatpush1.msra.mxu0 0.0
    %101 = vmatprep.subr.mxu0 0.0
    %102 = vmatpush1.msra.mxu0 0.0
    %103 = vmatprep.subr.mxu0 0.0
    %104 = vmatpush1.msra.mxu0 0.0
    %105 = vmatprep.subr.mxu0 0.0
    %106 = vmatpush1.msra.mxu0 0.0
    %107 = vmatprep.subr.mxu0 0.0
    %108 = vmatpush1.msra.mxu0 0.0
    %109 = vmatprep.subr.mxu0 0.0
    %110 = vmatpush1.msra.mxu0 0.0
    %111 = vmatprep.subr.mxu0 0.0
    %112 = vmatpush1.msra.mxu0 0.0
    %113 = vmatprep.subr.mxu0 0.0
    %114 = vmatpush1.msra.mxu0 0.0
    %115 = vmatprep.subr.mxu0 0.0
    %116 = vmatpush1.msra.mxu0 0.0
    %117 = vmatprep.subr.mxu0 0.0
    %118 = vmatpush1.msra.mxu0 0.0
    %119 = vmatprep.subr.mxu0 0.0
    %120 = vmatpush1.msra.mxu0 0.0
    %121 = vmatprep.subr.mxu0 0.0
    %122 = vmatpush1.msra.mxu0 0.0
    %123 = vmatprep.subr.mxu0 0.0
    %124 = vmatpush1.msra.mxu0 0.0
    %125 = vmatprep.subr.mxu0 0.0
    %126 = vmatpush1.msra.mxu0 0.0
    %127 = vmatprep.subr.mxu0 0.0
    %128 = vmatpush1.msra.mxu0 0.0
    %129 = vmatprep.subr.mxu0 0.0
    %130 = vmatpush1.msra.mxu0 0.0
    %131 = vmatprep.subr.mxu0 0.0
    %132 = vmatpush1.msra.mxu0 0.0
    %133 = vmatprep.subr.mxu0 0.0
    %134 = vmatpush1.msra.mxu0 0.0
    %135 = vmatprep.subr.mxu0 0.0
    %136 = vmatpush1.msra.mxu0 0.0
    %137 = vmatprep.subr.mxu0 0.0
    %138 = vmatpush1.msra.mxu0 0.0
    %139 = vmatprep.subr.mxu0 0.0
    %140 = vmatpush1.msra.mxu0 0.0
    %141 = vmatprep.subr.mxu0 0.0
    %142 = vmatpush1.msra.mxu0 0.0
    %143 = vmatprep.subr.mxu0 0.0
    %144 = vmatpush1.msra.mxu0 0.0
    %145 = vmatprep.subr.mxu0 0.0
    %146 = vmatpush1.msra.mxu0 0.0
    %147 = vmatprep.mubr.f32.mxu0 0.0
    %148 = vmatmul.mubr.f32.gmra.mrb[0].mxu0 %v67
    %v149 = vpop.f32.mrb[0].mxu0
    %v150 = vadd.f32 %v46, %v149
    %v151 = vpop.f32.mrb[0].mxu0
    %v152 = vadd.f32 %v46, %v151
    %153 = vmatprep.mubr.f32.mxu0 0.0
    %154 = vmatmul.mubr.f32.gmra.mrb[0].mxu0 %v70
    %v155 = vpop.f32.mrb[0].mxu0
    %v156 = vadd.f32 %v51, %v155
    %v157 = vpop.f32.mrb[0].mxu0
    %v158 = vadd.f32 %v51, %v157
    %159 = vmatprep.mubr.f32.mxu0 0.0
    %160 = vmatmul.mubr.f32.gmra.mrb[0].mxu0 %v73
    %v161 = vpop.f32.mrb[0].mxu0
    %v162 = vadd.f32 %v56, %v161
    %v163 = vpop.f32.mrb[0].mxu0
    %v164 = vadd.f32 %v56, %v163
    %165 = vmatprep.mubr.f32.mxu0 0.0
    %166 = vmatmul.mubr.f32.gmra.mrb[0].mxu0 %v76
    %v167 = vpop.f32.mrb[0].mxu0
    %v168 = vadd.f32 %v61, %v167
    %v169 = vpop.f32.mrb[0].mxu0
    %v170 = vadd.f32 %v61, %v169
    %171 = vdwg.mxu0
    %v172 = vmax.f32 %v150, 0.0
    %v173 = vmax.f32 %v152, 0.0
    %v174 = vmax.f32 %v156, 0.0
    %v175 = vmax.f32 %v158, 0.0
    %v176 = vmax.f32 %v162, 0.0
    %v177 = vmax.f32 %v164, 0.0
    %v178 = vmax.f32 %v168, 0.0
    %v179 = vmax.f32 %v170, 0.0
    %v180 = vadd.f32 %v172, %v173
    %181 = vadd.xlane.f32.xlu0 %v180
    %v182 = vpop.xlane.xlu0 %181
    %v183 = vadd.f32 %v174, %v175
    %184 = vadd.xlane.f32.xlu0 %v183
    %v185 = vpop.xlane.xlu0 %184
    %v186 = vadd.f32 %v176, %v177
    %187 = vadd.xlane.f32.xlu0 %v186
    %v188 = vpop.xlane.xlu0 %187
    %v189 = vadd.f32 %v178, %v179
    %190 = vadd.xlane.f32.xlu0 %v189
    %v191 = vpop.xlane.xlu0 %190
    %v192 = vrcp.pop 256.0
    %v193 = vmul.f32 %v182, %v192
    %v194 = vmul.f32 %v185, %v192
    %v195 = vmul.f32 %v188, %v192
    %v196 = vmul.f32 %v191, %v192
    %v197 = vld [vmem:[#allocation2] sm:$0xff]
    %v198 = vld [vmem:[#allocation2 + $0x8] sm:$0xff]
    %v199 = vld [vmem:[#allocation2 + $0x10] sm:$0xff]
    %v200 = vld [vmem:[#allocation2 + $0x18] sm:$0xff]
    %v201 = vld [vmem:[#allocation2 + $0x20] sm:$0xff]
    %v202 = vld [vmem:[#allocation2 + $0x28] sm:$0xff]
    %v203 = vld [vmem:[#allocation2 + $0x30] sm:$0xff]
    %v204 = vld [vmem:[#allocation2 + $0x38] sm:$0xff]
    %v205 = vld [vmem:[#allocation2 + $0x40] sm:$0xff]
    %v206 = vld [vmem:[#allocation2 + $0x48] sm:$0xff]
    %v207 = vld [vmem:[#allocation2 + $0x50] sm:$0xff]
    %v208 = vld [vmem:[#allocation2 + $0x58] sm:$0xff]
    %v209 = vld [vmem:[#allocation2 + $0x60] sm:$0xff]
    %v210 = vld [vmem:[#allocation2 + $0x68] sm:$0xff]
    %v211 = vld [vmem:[#allocation2 + $0x70] sm:$0xff]
    %v212 = vld [vmem:[#allocation2 + $0x78] sm:$0xff]
    %v213 = vld [vmem:[#allocation2 + $0x80] sm:$0xff]
    %v214 = vld [vmem:[#allocation2 + $0x88] sm:$0xff]
    %v215 = vld [vmem:[#allocation2 + $0x90] sm:$0xff]
    %v216 = vld [vmem:[#allocation2 + $0x98] sm:$0xff]
    %v217 = vld [vmem:[#allocation2 + $0xa0] sm:$0xff]
    %v218 = vld [vmem:[#allocation2 + $0xa8] sm:$0xff]
    %v219 = vld [vmem:[#allocation2 + $0xb0] sm:$0xff]
    %v220 = vld [vmem:[#allocation2 + $0xb8] sm:$0xff]
    %v221 = vld [vmem:[#allocation2 + $0xc0] sm:$0xff]
    %v222 = vld [vmem:[#allocation2 + $0xc8] sm:$0xff]
    %v223 = vld [vmem:[#allocation2 + $0xd0] sm:$0xff]
    %v224 = vld [vmem:[#allocation2 + $0xd8] sm:$0xff]
    %v225 = vld [vmem:[#allocation2 + $0xe0] sm:$0xff]
    %v226 = vld [vmem:[#allocation2 + $0xe8] sm:$0xff]
    %v227 = vld [vmem:[#allocation2 + $0xf0] sm:$0xff]
    %v228 = vld [vmem:[#allocation2 + $0xf8] sm:$0xff]
    %v229 = vld [vmem:[#allocation2 + $0x100] sm:$0xff]
    %v230 = vld [vmem:[#allocation2 + $0x108] sm:$0xff]
    %v231 = vld [vmem:[#allocation2 + $0x110] sm:$0xff]
    %v232 = vld [vmem:[#allocation2 + $0x118] sm:$0xff]
    %v233 = vld [vmem:[#allocation2 + $0x120] sm:$0xff]
    %v234 = vld [vmem:[#allocation2 + $0x128] sm:$0xff]
    %v235 = vld [vmem:[#allocation2 + $0x130] sm:$0xff]
    %v236 = vld [vmem:[#allocation2 + $0x138] sm:$0xff]
    %v237 = vld [vmem:[#allocation2 + $0x140] sm:$0xff]
    %v238 = vld [vmem:[#allocation2 + $0x148] sm:$0xff]
    %v239 = vld [vmem:[#allocation2 + $0x150] sm:$0xff]
    %v240 = vld [vmem:[#allocation2 + $0x158] sm:$0xff]
    %v241 = vld [vmem:[#allocation2 + $0x160] sm:$0xff]
    %v242 = vld [vmem:[#allocation2 + $0x168] sm:$0xff]
    %v243 = vld [vmem:[#allocation2 + $0x170] sm:$0xff]
    %v244 = vld [vmem:[#allocation2 + $0x178] sm:$0xff]
    %v245 = vld [vmem:[#allocation2 + $0x180] sm:$0xff]
    %v246 = vld [vmem:[#allocation2 + $0x188] sm:$0xff]
    %v247 = vld [vmem:[#allocation2 + $0x190] sm:$0xff]
    %v248 = vld [vmem:[#allocation2 + $0x198] sm:$0xff]
    %v249 = vmul.f32 %v193, %v197
    %v250 = vmul.f32 %v193, %v198
    %v251 = vmul.f32 %v193, %v199
    %v252 = vmul.f32 %v193, %v200
    %v253 = vmul.f32 %v193, %v201
    %v254 = vmul.f32 %v193, %v202
    %v255 = vmul.f32 %v193, %v203
    %v256 = vmul.f32 %v193, %v204
    %v257 = vmul.f32 %v193, %v205
    %v258 = vmul.f32 %v193, %v206
    %v259 = vmul.f32 %v193, %v207
    %v260 = vmul.f32 %v193, %v208
    %v261 = vmul.f32 %v193, %v209
    %v262 = vmul.f32 %v194, %v210
    %v263 = vmul.f32 %v194, %v211
    %v264 = vmul.f32 %v194, %v212
    %v265 = vmul.f32 %v194, %v213
    %v266 = vmul.f32 %v194, %v214
    %v267 = vmul.f32 %v194, %v215
    %v268 = vmul.f32 %v194, %v216
    %v269 = vmul.f32 %v194, %v217
    %v270 = vmul.f32 %v194, %v218
    %v271 = vmul.f32 %v194, %v219
    %v272 = vmul.f32 %v194, %v220
    %v273 = vmul.f32 %v194, %v221
    %v274 = vmul.f32 %v194, %v222
    %v275 = vmul.f32 %v195, %v223
    %v276 = vmul.f32 %v195, %v224
    %v277 = vmul.f32 %v195, %v225
    %v278 = vmul.f32 %v195, %v226
    %v279 = vmul.f32 %v195, %v227
    %v280 = vmul.f32 %v195, %v228
    %v281 = vmul.f32 %v195, %v229
    %v282 = vmul.f32 %v195, %v230
    %v283 = vmul.f32 %v195, %v231
    %v284 = vmul.f32 %v195, %v232
    %v285 = vmul.f32 %v195, %v233
    %v286 = vmul.f32 %v195, %v234
    %v287 = vmul.f32 %v195, %v235
    %v288 = vmul.f32 %v196, %v236
    %v289 = vmul.f32 %v196, %v237
    %v290 = vmul.f32 %v196, %v238
    %v291 = vmul.f32 %v196, %v239
    %v292 = vmul.f32 %v196, %v240
    %v293 = vmul.f32 %v196, %v241
    %v294 = vmul.f32 %v196, %v242
    %v295 = vmul.f32 %v196, %v243
    %v296 = vmul.f32 %v196, %v244
    %v297 = vmul.f32 %v196, %v245
    %v298 = vmul.f32 %v196, %v246
    %v299 = vmul.f32 %v196, %v247
    %v300 = vmul.f32 %v196, %v248
    %v301 = vadd.f32 %v249, %v262
    %v302 = vadd.f32 %v301, %v275
    %v303 = vadd.f32 %v302, %v288
    %v304 = vrot.slane %v303, 4
    %v305 = vadd.f32 %v303, %v304
    %v306 = vrot.slane %v305, 2
    %v307 = vadd.f32 %v305, %v306
    %v308 = vrot.slane %v307, 1
    %v309 = vadd.f32 %v307, %v308
    %v310 = vadd.f32 %v250, %v263
    %v311 = vadd.f32 %v310, %v276
    %v312 = vadd.f32 %v311, %v289
    %v313 = vrot.slane %v312, 4
    %v314 = vadd.f32 %v312, %v313
    %v315 = vrot.slane %v314, 2
    %v316 = vadd.f32 %v314, %v315
    %v317 = vrot.slane %v316, 1
    %v318 = vadd.f32 %v316, %v317
    %v319 = vadd.f32 %v251, %v264
    %v320 = vadd.f32 %v319, %v277
    %v321 = vadd.f32 %v320, %v290
    %v322 = vrot.slane %v321, 4
    %v323 = vadd.f32 %v321, %v322
    %v324 = vrot.slane %v323, 2
    %v325 = vadd.f32 %v323, %v324
    %v326 = vrot.slane %v325, 1
    %v327 = vadd.f32 %v325, %v326
    %v328 = vadd.f32 %v252, %v265
    %v329 = vadd.f32 %v328, %v278
    %v330 = vadd.f32 %v329, %v291
    %v331 = vrot.slane %v330, 4
    %v332 = vadd.f32 %v330, %v331
    %v333 = vrot.slane %v332, 2
    %v334 = vadd.f32 %v332, %v333
    %v335 = vrot.slane %v334, 1
    %v336 = vadd.f32 %v334, %v335
    %v337 = vadd.f32 %v253, %v266
    %v338 = vadd.f32 %v337, %v279
    %v339 = vadd.f32 %v338, %v292
    %v340 = vrot.slane %v339, 4
    %v341 = vadd.f32 %v339, %v340
    %v342 = vrot.slane %v341, 2
    %v343 = vadd.f32 %v341, %v342
    %v344 = vrot.slane %v343, 1
    %v345 = vadd.f32 %v343, %v344
    %v346 = vadd.f32 %v254, %v267
    %v347 = vadd.f32 %v346, %v280
    %v348 = vadd.f32 %v347, %v293
    %v349 = vrot.slane %v348, 4
    %v350 = vadd.f32 %v348, %v349
    %v351 = vrot.slane %v350, 2
    %v352 = vadd.f32 %v350, %v351
    %v353 = vrot.slane %v352, 1
    %v354 = vadd.f32 %v352, %v353
    %v355 = vadd.f32 %v255, %v268
    %v356 = vadd.f32 %v355, %v281
    %v357 = vadd.f32 %v356, %v294
    %v358 = vrot.slane %v357, 4
    %v359 = vadd.f32 %v357, %v358
    %v360 = vrot.slane %v359, 2
    %v361 = vadd.f32 %v359, %v360
    %v362 = vrot.slane %v361, 1
    %v363 = vadd.f32 %v361, %v362
    %v364 = vadd.f32 %v256, %v269
    %v365 = vadd.f32 %v364, %v282
    %v366 = vadd.f32 %v365, %v295
    %v367 = vrot.slane %v366, 4
    %v368 = vadd.f32 %v366, %v367
    %v369 = vrot.slane %v368, 2
    %v370 = vadd.f32 %v368, %v369
    %v371 = vrot.slane %v370, 1
    %v372 = vadd.f32 %v370, %v371
    %v373 = vadd.f32 %v257, %v270
    %v374 = vadd.f32 %v373, %v283
    %v375 = vadd.f32 %v374, %v296
    %v376 = vrot.slane %v375, 4
    %v377 = vadd.f32 %v375, %v376
    %v378 = vrot.slane %v377, 2
    %v379 = vadd.f32 %v377, %v378
    %v380 = vrot.slane %v379, 1
    %v381 = vadd.f32 %v379, %v380
    %v382 = vadd.f32 %v258, %v271
    %v383 = vadd.f32 %v382, %v284
    %v384 = vadd.f32 %v383, %v297
    %v385 = vrot.slane %v384, 4
    %v386 = vadd.f32 %v384, %v385
    %v387 = vrot.slane %v386, 2
    %v388 = vadd.f32 %v386, %v387
    %v389 = vrot.slane %v388, 1
    %v390 = vadd.f32 %v388, %v389
    %v391 = vadd.f32 %v259, %v272
    %v392 = vadd.f32 %v391, %v285
    %v393 = vadd.f32 %v392, %v298
    %v394 = vrot.slane %v393, 4
    %v395 = vadd.f32 %v393, %v394
    %v396 = vrot.slane %v395, 2
    %v397 = vadd.f32 %v395, %v396
    %v398 = vrot.slane %v397, 1
    %v399 = vadd.f32 %v397, %v398
    %v400 = vadd.f32 %v260, %v273
    %v401 = vadd.f32 %v400, %v286
    %v402 = vadd.f32 %v401, %v299
    %v403 = vrot.slane %v402, 4
    %v404 = vadd.f32 %v402, %v403
    %v405 = vrot.slane %v404, 2
    %v406 = vadd.f32 %v404, %v405
    %v407 = vrot.slane %v406, 1
    %v408 = vadd.f32 %v406, %v407
    %v409 = vadd.f32 %v261, %v274
    %v410 = vadd.f32 %v409, %v287
    %v411 = vadd.f32 %v410, %v300
    %v412 = vrot.slane %v411, 4
    %v413 = vadd.f32 %v411, %v412
    %v414 = vrot.slane %v413, 2
    %v415 = vadd.f32 %v413, %v414
    %v416 = vrot.slane %v415, 1
    %v417 = vadd.f32 %v415, %v416
    %v418 = vld [vmem:[%s4] sm:$0xff]
    %v419 = vld [vmem:[%s4 + $0x8] sm:$0x1f]
    %v422 = vlaneseq
    %v423 = vshrl.u32 %v422, 7
    %v424 = vsub.s32 0, %v423
    %v425 = vrot.slane %v418, %v424
    %v426 = vlaneseq
    %v427 = vshrl.u32 %v426, 7
    %v428 = vsub.s32 1, %v427
    %v429 = vrot.slane %v418, %v428
    %v430 = vlaneseq
    %v431 = vshrl.u32 %v430, 7
    %v432 = vsub.s32 2, %v431
    %v433 = vrot.slane %v418, %v432
    %v434 = vlaneseq
    %v435 = vshrl.u32 %v434, 7
    %v436 = vsub.s32 3, %v435
    %v437 = vrot.slane %v418, %v436
    %v438 = vlaneseq
    %v439 = vshrl.u32 %v438, 7
    %v440 = vsub.s32 4, %v439
    %v441 = vrot.slane %v418, %v440
    %v442 = vlaneseq
    %v443 = vshrl.u32 %v442, 7
    %v444 = vsub.s32 5, %v443
    %v445 = vrot.slane %v418, %v444
    %v446 = vlaneseq
    %v447 = vshrl.u32 %v446, 7
    %v448 = vsub.s32 6, %v447
    %v449 = vrot.slane %v418, %v448
    %v450 = vlaneseq
    %v451 = vshrl.u32 %v450, 7
    %v452 = vsub.s32 7, %v451
    %v453 = vrot.slane %v418, %v452
    %v454 = vlaneseq
    %v455 = vshrl.u32 %v454, 7
    %v456 = vsub.s32 0, %v455
    %v457 = vrot.slane %v419, %v456
    %v458 = vlaneseq
    %v459 = vshrl.u32 %v458, 7
    %v460 = vsub.s32 1, %v459
    %v461 = vrot.slane %v419, %v460
    %v462 = vlaneseq
    %v463 = vshrl.u32 %v462, 7
    %v464 = vsub.s32 2, %v463
    %v465 = vrot.slane %v419, %v464
    %v466 = vlaneseq
    %v467 = vshrl.u32 %v466, 7
    %v468 = vsub.s32 3, %v467
    %v469 = vrot.slane %v419, %v468
    %v470 = vlaneseq
    %v471 = vshrl.u32 %v470, 7
    %v472 = vsub.s32 4, %v471
    %v473 = vrot.slane %v419, %v472
    %v487 = vadd.f32 %v309, %v425
    %v488 = vadd.f32 %v318, %v429
    %v489 = vadd.f32 %v327, %v433
    %v490 = vadd.f32 %v336, %v437
    %v491 = vadd.f32 %v345, %v441
    %v492 = vadd.f32 %v354, %v445
    %v493 = vadd.f32 %v363, %v449
    %v494 = vadd.f32 %v372, %v453
    %v495 = vadd.f32 %v381, %v457
    %v496 = vadd.f32 %v390, %v461
    %v497 = vadd.f32 %v399, %v465
    %v498 = vadd.f32 %v408, %v469
    %v499 = vadd.f32 %v417, %v473
    %v500 = vlaneseq
    %v501 = vand.u32 %v500, 127
    %v502 = vadd.s32 %v501, 128
    %v503 = vadd.s32 %v501, 256
    %v504 = vadd.s32 %v501, 384
    %v505 = vadd.s32 %v501, 512
    %v506 = vadd.s32 %v501, 640
    %v507 = vadd.s32 %v501, 768
    %v508 = vadd.s32 %v501, 896
    %v509 = vadd.s32 %v501, 1024
    %v510 = vadd.s32 %v501, 1152
    %v511 = vadd.s32 %v501, 1280
    %v512 = vadd.s32 %v501, 1408
    %v513 = vadd.s32 %v501, 1536
    %vm514 = vcmp.lt.s32.totalorder %v501, 32
    %vm515 = vcmp.lt.s32.totalorder %v502, 32
    %vm516 = vcmp.lt.s32.totalorder %v503, 32
    %vm517 = vcmp.lt.s32.totalorder %v504, 32
    %vm518 = vcmp.lt.s32.totalorder %v505, 32
    %vm519 = vcmp.lt.s32.totalorder %v506, 32
    %vm520 = vcmp.lt.s32.totalorder %v507, 32
    %vm521 = vcmp.lt.s32.totalorder %v508, 32
    %vm522 = vcmp.lt.s32.totalorder %v509, 32
    %vm523 = vcmp.lt.s32.totalorder %v510, 32
    %vm524 = vcmp.lt.s32.totalorder %v511, 32
    %vm525 = vcmp.lt.s32.totalorder %v512, 32
    %vm526 = vcmp.lt.s32.totalorder %v513, 32
    %vm527 = vcmp.ge.s32.totalorder %v501, 72
    %vm528 = vcmp.ge.s32.totalorder %v502, 72
    %vm529 = vcmp.ge.s32.totalorder %v503, 72
    %vm530 = vcmp.ge.s32.totalorder %v504, 72
    %vm531 = vcmp.ge.s32.totalorder %v505, 72
    %vm532 = vcmp.ge.s32.totalorder %v506, 72
    %vm533 = vcmp.ge.s32.totalorder %v507, 72
    %vm534 = vcmp.ge.s32.totalorder %v508, 72
    %vm535 = vcmp.ge.s32.totalorder %v509, 72
    %vm536 = vcmp.ge.s32.totalorder %v510, 72
    %vm537 = vcmp.ge.s32.totalorder %v511, 72
    %vm538 = vcmp.ge.s32.totalorder %v512, 72
    %vm539 = vcmp.ge.s32.totalorder %v513, 72
    %vm540 = vcmp.lt.s32.totalorder %v501, 1640
    %vm541 = vcmp.lt.s32.totalorder %v502, 1640
    %vm542 = vcmp.lt.s32.totalorder %v503, 1640
    %vm543 = vcmp.lt.s32.totalorder %v504, 1640
    %vm544 = vcmp.lt.s32.totalorder %v505, 1640
    %vm545 = vcmp.lt.s32.totalorder %v506, 1640
    %vm546 = vcmp.lt.s32.totalorder %v507, 1640
    %vm547 = vcmp.lt.s32.totalorder %v508, 1640
    %vm548 = vcmp.lt.s32.totalorder %v509, 1640
    %vm549 = vcmp.lt.s32.totalorder %v510, 1640
    %vm550 = vcmp.lt.s32.totalorder %v511, 1640
    %vm551 = vcmp.lt.s32.totalorder %v512, 1640
    %vm552 = vcmp.lt.s32.totalorder %v513, 1640
    %vm553 = vmand %vm527, %vm540
    %vm554 = vmand %vm528, %vm541
    %vm555 = vmand %vm529, %vm542
    %vm556 = vmand %vm530, %vm543
    %vm557 = vmand %vm531, %vm544
    %vm558 = vmand %vm532, %vm545
    %vm559 = vmand %vm533, %vm546
    %vm560 = vmand %vm534, %vm547
    %vm561 = vmand %vm535, %vm548
    %vm562 = vmand %vm536, %vm549
    %vm563 = vmand %vm537, %vm550
    %vm564 = vmand %vm538, %vm551
    %vm565 = vmand %vm539, %vm552
    %vm566 = vmor %vm514, %vm553
    %vm567 = vmor %vm515, %vm554
    %vm568 = vmor %vm516, %vm555
    %vm569 = vmor %vm517, %vm556
    %vm570 = vmor %vm518, %vm557
    %vm571 = vmor %vm519, %vm558
    %vm572 = vmor %vm520, %vm559
    %vm573 = vmor %vm521, %vm560
    %vm574 = vmor %vm522, %vm561
    %vm575 = vmor %vm523, %vm562
    %vm576 = vmor %vm524, %vm563
    %vm577 = vmor %vm525, %vm564
    %vm578 = vmor %vm526, %vm565
    %v579 = vxor.u32 %v487, 2147483648
    %v580 = vxor.u32 %v488, 2147483648
    %v581 = vxor.u32 %v489, 2147483648
    %v582 = vxor.u32 %v490, 2147483648
    %v583 = vxor.u32 %v491, 2147483648
    %v584 = vxor.u32 %v492, 2147483648
    %v585 = vxor.u32 %v493, 2147483648
    %v586 = vxor.u32 %v494, 2147483648
    %v587 = vxor.u32 %v495, 2147483648
    %v588 = vxor.u32 %v496, 2147483648
    %v589 = vxor.u32 %v497, 2147483648
    %v590 = vxor.u32 %v498, 2147483648
    %v591 = vxor.u32 %v499, 2147483648
    %v592 = vmul.f32 %v579, 1.442695
    %v593 = vpow.pop %v592
    %v594 = vmul.f32 %v580, 1.442695
    %v595 = vpow.pop %v594
    %v596 = vmul.f32 %v581, 1.442695
    %v597 = vpow.pop %v596
    %v598 = vmul.f32 %v582, 1.442695
    %v599 = vpow.pop %v598
    %v600 = vmul.f32 %v583, 1.442695
    %v601 = vpow.pop %v600
    %v602 = vmul.f32 %v584, 1.442695
    %v603 = vpow.pop %v602
    %v604 = vmul.f32 %v585, 1.442695
    %v605 = vpow.pop %v604
    %v606 = vmul.f32 %v586, 1.442695
    %v607 = vpow.pop %v606
    %v608 = vmul.f32 %v587, 1.442695
    %v609 = vpow.pop %v608
    %v610 = vmul.f32 %v588, 1.442695
    %v611 = vpow.pop %v610
    %v612 = vmul.f32 %v589, 1.442695
    %v613 = vpow.pop %v612
    %v614 = vmul.f32 %v590, 1.442695
    %v615 = vpow.pop %v614
    %v616 = vmul.f32 %v591, 1.442695
    %v617 = vpow.pop %v616
    %v618 = vadd.f32 %v593, 1.0
    %v619 = vadd.f32 %v595, 1.0
    %v620 = vadd.f32 %v597, 1.0
    %v621 = vadd.f32 %v599, 1.0
    %v622 = vadd.f32 %v601, 1.0
    %v623 = vadd.f32 %v603, 1.0
    %v624 = vadd.f32 %v605, 1.0
    %v625 = vadd.f32 %v607, 1.0
    %v626 = vadd.f32 %v609, 1.0
    %v627 = vadd.f32 %v611, 1.0
    %v628 = vadd.f32 %v613, 1.0
    %v629 = vadd.f32 %v615, 1.0
    %v630 = vadd.f32 %v617, 1.0
    %v631 = vrcp.pop %v618
    %v632 = vmul.f32 1.0, %v631
    %v633 = vrcp.pop %v619
    %v634 = vmul.f32 1.0, %v633
    %v635 = vrcp.pop %v620
    %v636 = vmul.f32 1.0, %v635
    %v637 = vrcp.pop %v621
    %v638 = vmul.f32 1.0, %v637
    %v639 = vrcp.pop %v622
    %v640 = vmul.f32 1.0, %v639
    %v641 = vrcp.pop %v623
    %v642 = vmul.f32 1.0, %v641
    %v643 = vrcp.pop %v624
    %v644 = vmul.f32 1.0, %v643
    %v645 = vrcp.pop %v625
    %v646 = vmul.f32 1.0, %v645
    %v647 = vrcp.pop %v626
    %v648 = vmul.f32 1.0, %v647
    %v649 = vrcp.pop %v627
    %v650 = vmul.f32 1.0, %v649
    %v651 = vrcp.pop %v628
    %v652 = vmul.f32 1.0, %v651
    %v653 = vrcp.pop %v629
    %v654 = vmul.f32 1.0, %v653
    %v655 = vrcp.pop %v630
    %v656 = vmul.f32 1.0, %v655
    %v657 = vsel %vm566, %v632, %v487
    %v658 = vsel %vm567, %v634, %v488
    %v659 = vsel %vm568, %v636, %v489
    %v660 = vsel %vm569, %v638, %v490
    %v661 = vsel %vm570, %v640, %v491
    %v662 = vsel %vm571, %v642, %v492
    %v663 = vsel %vm572, %v644, %v493
    %v664 = vsel %vm573, %v646, %v494
    %v665 = vsel %vm574, %v648, %v495
    %v666 = vsel %vm575, %v650, %v496
    %v667 = vsel %vm576, %v652, %v497
    %v668 = vsel %vm577, %v654, %v498
    %v669 = vsel %vm578, %v656, %v499
    %v683 = vcombine.low %v657, %v658
    %v684 = vcombine.low %v659, %v660
    %v685 = vcombine.low %v661, %v662
    %v686 = vcombine.low %v663, %v664
    %v688 = vunpack.c.l.s4 1966171168
    %v689 = vunpack.c.0.s8 %v688
    %v690 = vlaneseq
    %v691 = vshrl.u32 %v690, 7
    %v692 = vsub.s32 %v689, %v691
    %v693 = vrot.slane %v683, %v692
    %v695 = vunpack.c.l.s4 1966171168
    %v696 = vunpack.c.0.s8 %v695
    %v697 = vlaneseq
    %v698 = vshrl.u32 %v697, 7
    %v699 = vsub.s32 %v696, %v698
    %v700 = vrot.slane %v684, %v699
    %v702 = vunpack.c.l.s4 1966171168
    %v703 = vunpack.c.0.s8 %v702
    %v704 = vlaneseq
    %v705 = vshrl.u32 %v704, 7
    %v706 = vsub.s32 %v703, %v705
    %v707 = vrot.slane %v685, %v706
    %v709 = vunpack.c.l.s4 1966171168
    %v710 = vunpack.c.0.s8 %v709
    %v711 = vlaneseq
    %v712 = vshrl.u32 %v711, 7
    %v713 = vsub.s32 %v710, %v712
    %v714 = vrot.slane %v686, %v713
    %v715 = vcombine.low %v693, %v700
    %v716 = vcombine.low %v707, %v714
    %v718 = vunpack.c.l.s4 1966171168
    %v719 = vunpack.c.0.s8 %v718
    %v720 = vlaneseq
    %v721 = vshrl.u32 %v720, 7
    %v722 = vsub.s32 %v719, %v721
    %v723 = vrot.slane %v715, %v722
    %v725 = vunpack.c.l.s4 1966171168
    %v726 = vunpack.c.0.s8 %v725
    %v727 = vlaneseq
    %v728 = vshrl.u32 %v727, 7
    %v729 = vsub.s32 %v726, %v728
    %v730 = vrot.slane %v716, %v729
    %v731 = vcombine.low %v723, %v730
    %v732 = vcombine.low %v665, %v666
    %v733 = vcombine.low %v667, %v668
    %v735 = vunpack.c.l.s4 1966171168
    %v736 = vunpack.c.0.s8 %v735
    %v737 = vlaneseq
    %v738 = vshrl.u32 %v737, 7
    %v739 = vsub.s32 %v736, %v738
    %v740 = vrot.slane %v732, %v739
    %v742 = vunpack.c.l.s4 1966171168
    %v743 = vunpack.c.0.s8 %v742
    %v744 = vlaneseq
    %v745 = vshrl.u32 %v744, 7
    %v746 = vsub.s32 %v743, %v745
    %v747 = vrot.slane %v733, %v746
    %v749 = vunpack.c.l.s4 1966171168
    %v750 = vunpack.c.0.s8 %v749
    %v751 = vlaneseq
    %v752 = vshrl.u32 %v751, 7
    %v753 = vsub.s32 %v750, %v752
    %v754 = vrot.slane %v669, %v753
    %v755 = vcombine.low %v740, %v747
    %v757 = vunpack.c.l.s4 1966171168
    %v758 = vunpack.c.0.s8 %v757
    %v759 = vlaneseq
    %v760 = vshrl.u32 %v759, 7
    %v761 = vsub.s32 %v758, %v760
    %v762 = vrot.slane %v755, %v761
    %v764 = vunpack.c.l.s4 1966171168
    %v765 = vunpack.c.0.s8 %v764
    %v766 = vlaneseq
    %v767 = vshrl.u32 %v766, 7
    %v768 = vsub.s32 %v765, %v767
    %v769 = vrot.slane %v754, %v768
    %v770 = vcombine.low %v762, %v769
    %773 = vst [vmem:[%s5] sm:$0xff] %v731
    %v774 = vlaneseq
    %vm775 = vcmp.ge.s32.totalorder %v774, 0
    %vm776 = vcmp.lt.s32.totalorder %v774, 640
    %vm777 = vmand %vm775, %vm776
    %778 = vst.msk [vmem:[%s5 + $0x8] sm:$0x1f] %vm777, %v770
    // Predicated region
    $region26: #{_lambda_.1} parent=1 // pred_check
      _
    $region27: #{_lambda_.1} parent=1 // pred_check_branch
      %780 = sbr.rel (0) target = $region29
    $region28: #{_lambda_.1} parent=1 // pred_region
      _
    $region29: #{_lambda_.1} parent=1 // pred_fallthru
      _
    // Predicated region
    $region30: #{_lambda_.1} parent=1 // pred_check
      _
    $region31: #{_lambda_.1} parent=1 // pred_check_branch
      %782 = sbr.rel (0) target = $region33
    $region32: #{_lambda_.1} parent=1 // pred_region
      _
    $region33: #{_lambda_.1} parent=1 // pred_fallthru
      _
    %783 = vsyncpa [#allocation3], 1

</llo_original>
